<compile_context>
chip_gen: v5e
topology: v5e:2x2
jax: 0.10.0
libtpu: 0.0.40
codegen_flags: <defaults>
</compile_context>

<pallas_src>
import functools

import numpy as np
import jax
import jax.numpy as jnp
from jax import lax
from jax.experimental import pallas as pl
from jax.experimental.pallas import tpu as pltpu


def _addstcn_kernel(x_ref, a_ref, dww_ref, dwb_ref, pre_ref, effw_ref,
                    effb_ref, mask_ref, o_ref, *, num_levels, kernel_size,
                    dilation_c, per_tap_masks, compute_dtype):
    """One batch tile.  x_ref: (nb, C, T_pad); params are per-channel."""
    K = kernel_size
    L = num_levels
    f32 = jnp.float32
    T = x_ref.shape[-1]

    # Channel attention (softmax over channels precomputed in the wrapper).
    h = x_ref[...].astype(f32) * a_ref[...]                    # (nb, C, T) f32

    for l in range(L):
        d = dilation_c ** l
        w = dww_ref[l]                                          # (C, K) compute dtype
        b = dwb_ref[l]                                          # (C, 1) f32
        inp = h                                                 # residual, f32
        inp_c = inp.astype(compute_dtype)
        if (not per_tap_masks) and K > 1 and l > 0:
            # Tail-zero mode: keep the padded tail at 0 so the circular rolls
            # below wrap zeros (1 multiply per level instead of 1 per tap).
            # Tail lanes of h/out still accumulate garbage, but it never
            # reaches real lanes and is sliced off in the wrapper.
            inp_c = inp_c * mask_ref[0:1, :]

        # Depthwise causal dilated conv (Conv1d groups=C, left pad, Chomp1d):
        # tap K-1 is unshifted, tap k reads the input shifted right by
        # s = (K-1-k)*d.  The roll is XLU work (free slot next to the VPU).
        acc = inp_c * w[:, K - 1:K]
        for k in range(K - 1):
            s = (K - 1 - k) * d
            tap = pltpu.roll(inp_c, shift=s % T, axis=2)
            if per_tap_masks:
                tap = tap * mask_ref[l * (K - 1) + k:l * (K - 1) + k + 1, :]
            acc = acc + w[:, k:k + 1] * tap
        out = acc.astype(f32) + b

        if l == L - 1 and L >= 2:
            # LastBlock: residual only -- its channel Linear (and the 1x1
            # pointwise conv) are folded into effw/effb below.
            h = out + inp
        else:
            z = out if l == 0 else out + inp                    # FirstBlock: no residual
            p = pre_ref[l]                                      # (C, 1) PReLU slope
            h = jnp.where(z > 0, z, p * z)

    # Pointwise Conv1d(C->1,1) [+ folded LastBlock Linear]: per-channel scale
    # and a channel (sublane) reduction.  No MXU, cost independent of the
    # batch-tile size.
    y = jnp.sum(h * effw_ref[...], axis=1, keepdims=True) + effb_ref[...]
    o_ref[...] = y.astype(o_ref.dtype)


def _pick_dtypes(C, compute_dtype, stream_dtype):
    kind = ""
    try:
        kind = jax.devices()[0].device_kind.lower()
    except Exception:
        pass
    is_tpu = "tpu" in kind
    bf16_vpu = any(t in kind for t in ("v6", "v7", "7x"))
    if compute_dtype is None:
        # bf16 VALU packing only pays when the channel (sublane) dim is dense
        # at bf16's (16, 128) tiling; otherwise layout padding eats the win.
        compute_dtype = jnp.bfloat16 if (bf16_vpu and C % 16 == 0) else jnp.float32
    if stream_dtype is None:
        # Stream x from HBM in bf16 on TPU (halves the dominant read; compute
        # precision is governed by compute_dtype -- f32 on v5e).
        stream_dtype = jnp.bfloat16 if is_tpu else compute_dtype
    return jnp.dtype(compute_dtype), jnp.dtype(stream_dtype)


def addstcn_forward(x, params, *, num_levels, kernel_size, dilation_c,
                    batch_tile=None, compute_dtype=None, stream_dtype=None):
    N, C, T = x.shape
    L, K = num_levels, kernel_size
    compute_dtype, stream_dtype = _pick_dtypes(C, compute_dtype, stream_dtype)

    # ---- tiny trace-time parameter folding ----------------------------------
    a = jax.nn.softmax(params["attn"].astype(jnp.float32), axis=0)        # (C, 1)
    if L >= 2:
        # Fold pointwise Conv1d(C->1,1) into the LastBlock Linear:
        #   y = pw^T (lin_w z + lin_b) + pw_b = eff_w z + eff_b
        pw = params["pw_w"][:, 0].astype(jnp.float32)                     # (C,)
        eff_w = pw @ params["lin_w"].astype(jnp.float32)                  # (C,)
        eff_b = (pw @ params["lin_b"][:, 0].astype(jnp.float32)
                 + params["pw_b"][0, 0].astype(jnp.float32))
    else:
        eff_w = params["pw_w"][:, 0].astype(jnp.float32)
        eff_b = params["pw_b"][0, 0].astype(jnp.float32)
    effw = eff_w.reshape(C, 1)
    effb = eff_b.reshape(1, 1)

    dww = params["dw_w"].astype(compute_dtype)                            # (L, C, K)
    dwb = params["dw_b"].astype(jnp.float32)                              # (L, C, 1)
    pre = params["prelu"].astype(jnp.float32)                             # (L, C, 1)

    # ---- time padding: lane-dense; pick the roll-masking strategy -----------
    max_shift = (K - 1) * (dilation_c ** (L - 1)) if K > 1 else 0
    if T % 128 == 0:
        T_pad = T
        per_tap = True      # no zero tail available -> one 0/1 mask per tap
    else:
        # Pad past the max causal shift so circular rolls only wrap zeros.
        T_pad = int(pl.cdiv(T + max_shift, 128)) * 128
        per_tap = False

    lanes = np.arange(T_pad)
    if K > 1 and per_tap:
        rows = [(lanes >= (K - 1 - k) * (dilation_c ** l)).astype(np.float32)
                for l in range(L) for k in range(K - 1)]
        masks_np = np.stack(rows)                                         # (L*(K-1), T_pad)
    elif K > 1:
        masks_np = (lanes < T).astype(np.float32)[None]                   # (1, T_pad)
    else:
        masks_np = np.ones((1, T_pad), np.float32)
    masks = jnp.asarray(masks_np, dtype=compute_dtype)

    # ---- VMEM budget and batch tile ------------------------------------------
    try:
        vmem_cap = int(pltpu.get_tpu_info().vmem_capacity_bytes)
    except Exception:
        vmem_cap = 64 * 1024 * 1024                  # assume the small (v7x) part
    vmem_limit = min(vmem_cap * 3 // 4, 96 * 1024 * 1024)  # 48 MiB v7x, 96 MiB v5e/v6e

    if batch_tile is None:
        c_pad = -(-C // 8) * 8                       # f32 sublane padding of C
        per_sample = c_pad * T_pad * 4               # one (C, T_pad) f32 slab
        live = 8                                     # ~2 x-buffers + ~6 level temps
        nb = max(1, (vmem_limit // 2) // (per_sample * live))
        nb = min(nb, N)
        if nb >= N and N >= 2:
            nb = (N + 1) // 2        # >= 2 grid steps: pipeline + both v7x cores
        if N % nb != 0:              # prefer a tile that divides N (skip the pad copy)
            for div in range(nb, 0, -1):
                if N % div == 0:
                    if div * 2 >= nb:
                        nb = div
                    break
    else:
        nb = max(1, min(batch_tile, N))
    N_pad = int(pl.cdiv(N, nb)) * nb
    num_blocks = N_pad // nb

    # ---- x: copy only when padding / a dtype change is actually required ----
    if (N_pad, T_pad) != (N, T):
        xp = jnp.zeros((N_pad, C, T_pad), stream_dtype)
        xp = xp.at[:N, :, :T].set(x.astype(stream_dtype))
    else:
        xp = x.astype(stream_dtype)                  # no-op when dtypes match

    kernel = functools.partial(
        _addstcn_kernel, num_levels=L, kernel_size=K, dilation_c=dilation_c,
        per_tap_masks=per_tap, compute_dtype=compute_dtype)

    def _full(arr):
        nd = arr.ndim
        return pl.BlockSpec(arr.shape, lambda n, _z=(0,) * nd: _z)

    flops = N_pad * C * T_pad * (L * (2 * K + 6) + 4)
    bytes_accessed = (xp.size * xp.dtype.itemsize + N_pad * T_pad * 4
                      + 4 * (a.size + dww.size + dwb.size + pre.size
                             + effw.size + effb.size + masks.size))
    cost = pl.CostEstimate(flops=int(flops), transcendentals=0,
                           bytes_accessed=int(bytes_accessed))

    out = pl.pallas_call(
        kernel,
        out_shape=jax.ShapeDtypeStruct((N_pad, 1, T_pad), jnp.float32),
        grid=(num_blocks,),
        in_specs=[pl.BlockSpec((nb, C, T_pad), lambda n: (n, 0, 0)),
                  _full(a), _full(dww), _full(dwb), _full(pre),
                  _full(effw), _full(effb), _full(masks)],
        out_specs=pl.BlockSpec((nb, 1, T_pad), lambda n: (n, 0, 0)),
        compiler_params=pltpu.CompilerParams(
            dimension_semantics=("parallel",),
            vmem_limit_bytes=int(vmem_limit)),
        cost_estimate=cost,
    )(xp, a, dww, dwb, pre, effw, effb, masks)

    y = out[:N, 0, :T]                               # (N, T)
    return y[:, :, None]                             # (N, T, 1) == y1.transpose(1, 2)


def addstcn_reference(x, params, *, num_levels, kernel_size, dilation_c):
    """Pure-JAX reference mirroring the PyTorch module (lax.conv based)."""
    N, C, T = x.shape
    a = jax.nn.softmax(params["attn"], axis=0)
    h = x * a[None]
    for l in range(num_levels):
        d = dilation_c ** l
        p = (kernel_size - 1) * d
        w = params["dw_w"][l][:, None, :]                    # (C, 1, K), groups=C
        out = lax.conv_general_dilated(
            h, w, window_strides=(1,), padding=[(p, p)], rhs_dilation=(d,),
            dimension_numbers=("NCH", "OIH", "NCH"), feature_group_count=C)
        if p > 0:
            out = out[:, :, :-p]                             # Chomp1d
        out = out + params["dw_b"][l][None]
        if l == 0:
            pr = params["prelu"][0][None]
            h = jnp.where(out > 0, out, pr * out)
        elif l == num_levels - 1:
            z = out + h
            h = jnp.einsum("oc,nct->not", params["lin_w"], z) + params["lin_b"][None]
        else:
            pr = params["prelu"][l][None]
            z = out + h
            h = jnp.where(z > 0, z, pr * z)
    y = jnp.einsum("co,nct->not", params["pw_w"], h) + params["pw_b"][None]
    return jnp.transpose(y, (0, 2, 1))


def _make_params(key, C, L, K):
    ks = jax.random.split(key, 7)
    params = dict(
        attn=jnp.ones((C, 1), jnp.float32),                                   # th.ones(input_size, 1)
        dw_w=(0.1 * jax.random.normal(ks[0], (L, C, K))).astype(jnp.float32),
        dw_b=(0.1 * jax.random.normal(ks[1], (L, C, 1))).astype(jnp.float32),
        prelu=jnp.full((L, C, 1), 0.25, jnp.float32),                         # nn.PReLU default slope
        lin_w=(0.01 * jax.random.normal(ks[2], (C, C))).astype(jnp.float32),  # LastBlock Linear
        lin_b=(0.01 * jax.random.normal(ks[3], (C, 1))).astype(jnp.float32),
        pw_w=(0.1 * jax.random.normal(ks[4], (C, 1))).astype(jnp.float32),    # Conv1d(C,1,1)
        pw_b=(0.1 * jax.random.normal(ks[5], (1, 1))).astype(jnp.float32),
    )
    return params, ks[6]


if __name__ == "__main__":
    key = jax.random.PRNGKey(0)

    # Case 1: batch=2, input_size=4 channels, seq=16 -> time padding needed,
    # tail-zero roll path.  FirstBlock + TemporalBlock + LastBlock.
    N, C, T = 2, 4, 16
    L, K, D = 3, 2, 2
    params, kx = _make_params(key, C, L, K)
    x = jax.random.normal(kx, (N, C, T), jnp.float32)
    y = addstcn_forward(x, params, num_levels=L, kernel_size=K, dilation_c=D,
                        compute_dtype=jnp.float32, stream_dtype=jnp.float32)
    y = jax.block_until_ready(y)
    y_ref = addstcn_reference(x, params, num_levels=L, kernel_size=K, dilation_c=D)
    assert y.shape == (N, T, 1)
    np.testing.assert_allclose(np.asarray(y), np.asarray(y_ref), rtol=1e-2, atol=1e-3)

    # Case 2: seq already a multiple of 128 -> zero-copy fast path with
    # precomputed per-tap masks.
    T2 = 128
    x2 = jax.random.normal(jax.random.PRNGKey(1), (N, C, T2), jnp.float32)
    y2 = addstcn_forward(x2, params, num_levels=L, kernel_size=K, dilation_c=D,
                         compute_dtype=jnp.float32, stream_dtype=jnp.float32)
    y2 = jax.block_until_ready(y2)
    y2_ref = addstcn_reference(x2, params, num_levels=L, kernel_size=K, dilation_c=D)
    np.testing.assert_allclose(np.asarray(y2), np.asarray(y2_ref), rtol=1e-2, atol=1e-3)

    # Case 3: auto dtypes (bf16 HBM streaming; bf16 compute only where it pays).
    y3 = addstcn_forward(x, params, num_levels=L, kernel_size=K, dilation_c=D)
    y3 = jax.block_until_ready(y3)
    np.testing.assert_allclose(np.asarray(y3), np.asarray(y_ref), rtol=5e-2, atol=2e-2)

    # Case 4: single-level net (FirstBlock only) with kernel_size=3.
    L4, K4 = 1, 3
    params4, kx4 = _make_params(jax.random.PRNGKey(2), C, L4, K4)
    x4 = jax.random.normal(kx4, (N, C, T), jnp.float32)
    y4 = addstcn_forward(x4, params4, num_levels=L4, kernel_size=K4, dilation_c=D,
                         compute_dtype=jnp.float32, stream_dtype=jnp.float32)
    y4 = jax.block_until_ready(y4)
    y4_ref = addstcn_reference(x4, params4, num_levels=L4, kernel_size=K4, dilation_c=D)
    np.testing.assert_allclose(np.asarray(y4), np.asarray(y4_ref), rtol=1e-2, atol=1e-3)

    print("KERNEL_OK")
</pallas_src>

<mosaic_0001>
module attributes {stable_mosaic.version = 11 : i64} {
  func.func @_addstcn_kernel(%arg0: i32, %arg1: memref<1x4x128xf32, #tpu.memory_space<vmem>>, %arg2: memref<4x1xf32, #tpu.memory_space<vmem>>, %arg3: memref<3x4x2xf32, #tpu.memory_space<vmem>>, %arg4: memref<3x4x1xf32, #tpu.memory_space<vmem>>, %arg5: memref<3x4x1xf32, #tpu.memory_space<vmem>>, %arg6: memref<4x1xf32, #tpu.memory_space<vmem>>, %arg7: memref<1x1xf32, #tpu.memory_space<vmem>>, %arg8: memref<1x128xf32, #tpu.memory_space<vmem>>, %arg9: memref<1x1x128xf32, #tpu.memory_space<vmem>>) attributes {dimension_semantics = [#tpu.dimension_semantics<parallel>], iteration_bounds = array<i64: 2>, scalar_prefetch = 0 : i64, scratch_operands = 0 : i64, tpu.core_type = #tpu.core_type<tc>, window_params = [{transform_indices = @transform_0, window_bounds = array<i64: 1, 4, 128>}, {pipeline_mode = #tpu.pipeline_mode<synchronous>, transform_indices = @transform_1, window_bounds = array<i64: 4, 1>}, {pipeline_mode = #tpu.pipeline_mode<synchronous>, transform_indices = @transform_2, window_bounds = array<i64: 3, 4, 2>}, {pipeline_mode = #tpu.pipeline_mode<synchronous>, transform_indices = @transform_3, window_bounds = array<i64: 3, 4, 1>}, {pipeline_mode = #tpu.pipeline_mode<synchronous>, transform_indices = @transform_4, window_bounds = array<i64: 3, 4, 1>}, {pipeline_mode = #tpu.pipeline_mode<synchronous>, transform_indices = @transform_5, window_bounds = array<i64: 4, 1>}, {pipeline_mode = #tpu.pipeline_mode<synchronous>, transform_indices = @transform_6, window_bounds = array<i64: 1, 1>}, {pipeline_mode = #tpu.pipeline_mode<synchronous>, transform_indices = @transform_7, window_bounds = array<i64: 1, 128>}, {transform_indices = @transform_8, window_bounds = array<i64: 1, 1, 128>}]} {
    %c0 = arith.constant 0 : index
    %c0_0 = arith.constant 0 : index
    %c0_1 = arith.constant 0 : index
    %0 = vector.load %arg1[%c0, %c0_0, %c0_1] : memref<1x4x128xf32, #tpu.memory_space<vmem>>, vector<1x4x128xf32>
    %c0_2 = arith.constant 0 : index
    %c0_3 = arith.constant 0 : index
    %1 = vector.load %arg2[%c0_2, %c0_3] : memref<4x1xf32, #tpu.memory_space<vmem>>, vector<4x1xf32>
    %2 = vector.shape_cast %1 : vector<4x1xf32> to vector<1x4x1xf32>
    %3 = vector.broadcast %2 : vector<1x4x1xf32> to vector<1x4x128xf32>
    %4 = arith.mulf %0, %3 : vector<1x4x128xf32>
    %c0_4 = arith.constant 0 : index
    %c0_5 = arith.constant 0 : index
    %c0_6 = arith.constant 0 : index
    %5 = vector.load %arg3[%c0_4, %c0_5, %c0_6] : memref<3x4x2xf32, #tpu.memory_space<vmem>>, vector<1x4x2xf32>
    %6 = vector.shape_cast %5 : vector<1x4x2xf32> to vector<4x2xf32>
    %c0_7 = arith.constant 0 : index
    %c0_8 = arith.constant 0 : index
    %c0_9 = arith.constant 0 : index
    %7 = vector.load %arg4[%c0_7, %c0_8, %c0_9] : memref<3x4x1xf32, #tpu.memory_space<vmem>>, vector<1x4x1xf32>
    %8 = vector.shape_cast %7 : vector<1x4x1xf32> to vector<4x1xf32>
    %9 = vector.extract_strided_slice %6 {offsets = [0, 1], sizes = [4, 1], strides = [1, 1]} : vector<4x2xf32> to vector<4x1xf32>
    %10 = vector.shape_cast %9 : vector<4x1xf32> to vector<1x4x1xf32>
    %11 = vector.broadcast %10 : vector<1x4x1xf32> to vector<1x4x128xf32>
    %12 = arith.mulf %4, %11 : vector<1x4x128xf32>
    %c1_i32 = arith.constant 1 : i32
    %13 = tpu.dynamic_rotate %4 by %c1_i32 dim 2 : vector<1x4x128xf32>, i32 -> vector<1x4x128xf32>
    %14 = vector.extract_strided_slice %6 {offsets = [0, 0], sizes = [4, 1], strides = [1, 1]} : vector<4x2xf32> to vector<4x1xf32>
    %15 = vector.shape_cast %14 : vector<4x1xf32> to vector<1x4x1xf32>
    %16 = vector.broadcast %15 : vector<1x4x1xf32> to vector<1x4x128xf32>
    %17 = arith.mulf %16, %13 : vector<1x4x128xf32>
    %18 = arith.addf %12, %17 : vector<1x4x128xf32>
    %19 = vector.shape_cast %8 : vector<4x1xf32> to vector<1x4x1xf32>
    %20 = vector.broadcast %19 : vector<1x4x1xf32> to vector<1x4x128xf32>
    %21 = arith.addf %18, %20 : vector<1x4x128xf32>
    %c0_10 = arith.constant 0 : index
    %c0_11 = arith.constant 0 : index
    %c0_12 = arith.constant 0 : index
    %22 = vector.load %arg5[%c0_10, %c0_11, %c0_12] : memref<3x4x1xf32, #tpu.memory_space<vmem>>, vector<1x4x1xf32>
    %23 = vector.shape_cast %22 : vector<1x4x1xf32> to vector<4x1xf32>
    %cst = arith.constant 0.000000e+00 : f32
    %24 = vector.broadcast %cst : f32 to vector<1x4x128xf32>
    %25 = arith.cmpf ogt, %21, %24 : vector<1x4x128xf32>
    %26 = vector.shape_cast %23 : vector<4x1xf32> to vector<1x4x1xf32>
    %27 = vector.broadcast %26 : vector<1x4x1xf32> to vector<1x4x128xf32>
    %28 = arith.mulf %27, %21 : vector<1x4x128xf32>
    %29 = arith.select %25, %21, %28 : vector<1x4x128xi1>, vector<1x4x128xf32>
    %c1 = arith.constant 1 : index
    %c0_13 = arith.constant 0 : index
    %c0_14 = arith.constant 0 : index
    %30 = vector.load %arg3[%c1, %c0_13, %c0_14] : memref<3x4x2xf32, #tpu.memory_space<vmem>>, vector<1x4x2xf32>
    %31 = vector.shape_cast %30 : vector<1x4x2xf32> to vector<4x2xf32>
    %c1_15 = arith.constant 1 : index
    %c0_16 = arith.constant 0 : index
    %c0_17 = arith.constant 0 : index
    %32 = vector.load %arg4[%c1_15, %c0_16, %c0_17] : memref<3x4x1xf32, #tpu.memory_space<vmem>>, vector<1x4x1xf32>
    %33 = vector.shape_cast %32 : vector<1x4x1xf32> to vector<4x1xf32>
    %c0_18 = arith.constant 0 : index
    %c0_19 = arith.constant 0 : index
    %34 = vector.load %arg8[%c0_18, %c0_19] : memref<1x128xf32, #tpu.memory_space<vmem>>, vector<1x128xf32>
    %35 = vector.shape_cast %34 : vector<1x128xf32> to vector<1x1x128xf32>
    %36 = vector.broadcast %35 : vector<1x1x128xf32> to vector<1x4x128xf32>
    %37 = arith.mulf %29, %36 : vector<1x4x128xf32>
    %38 = vector.extract_strided_slice %31 {offsets = [0, 1], sizes = [4, 1], strides = [1, 1]} : vector<4x2xf32> to vector<4x1xf32>
    %39 = vector.shape_cast %38 : vector<4x1xf32> to vector<1x4x1xf32>
    %40 = vector.broadcast %39 : vector<1x4x1xf32> to vector<1x4x128xf32>
    %41 = arith.mulf %37, %40 : vector<1x4x128xf32>
    %c2_i32 = arith.constant 2 : i32
    %42 = tpu.dynamic_rotate %37 by %c2_i32 dim 2 : vector<1x4x128xf32>, i32 -> vector<1x4x128xf32>
    %43 = vector.extract_strided_slice %31 {offsets = [0, 0], sizes = [4, 1], strides = [1, 1]} : vector<4x2xf32> to vector<4x1xf32>
    %44 = vector.shape_cast %43 : vector<4x1xf32> to vector<1x4x1xf32>
    %45 = vector.broadcast %44 : vector<1x4x1xf32> to vector<1x4x128xf32>
    %46 = arith.mulf %45, %42 : vector<1x4x128xf32>
    %47 = arith.addf %41, %46 : vector<1x4x128xf32>
    %48 = vector.shape_cast %33 : vector<4x1xf32> to vector<1x4x1xf32>
    %49 = vector.broadcast %48 : vector<1x4x1xf32> to vector<1x4x128xf32>
    %50 = arith.addf %47, %49 : vector<1x4x128xf32>
    %51 = arith.addf %50, %29 : vector<1x4x128xf32>
    %c1_20 = arith.constant 1 : index
    %c0_21 = arith.constant 0 : index
    %c0_22 = arith.constant 0 : index
    %52 = vector.load %arg5[%c1_20, %c0_21, %c0_22] : memref<3x4x1xf32, #tpu.memory_space<vmem>>, vector<1x4x1xf32>
    %53 = vector.shape_cast %52 : vector<1x4x1xf32> to vector<4x1xf32>
    %cst_23 = arith.constant 0.000000e+00 : f32
    %54 = vector.broadcast %cst_23 : f32 to vector<1x4x128xf32>
    %55 = arith.cmpf ogt, %51, %54 : vector<1x4x128xf32>
    %56 = vector.shape_cast %53 : vector<4x1xf32> to vector<1x4x1xf32>
    %57 = vector.broadcast %56 : vector<1x4x1xf32> to vector<1x4x128xf32>
    %58 = arith.mulf %57, %51 : vector<1x4x128xf32>
    %59 = arith.select %55, %51, %58 : vector<1x4x128xi1>, vector<1x4x128xf32>
    %c2 = arith.constant 2 : index
    %c0_24 = arith.constant 0 : index
    %c0_25 = arith.constant 0 : index
    %60 = vector.load %arg3[%c2, %c0_24, %c0_25] : memref<3x4x2xf32, #tpu.memory_space<vmem>>, vector<1x4x2xf32>
    %61 = vector.shape_cast %60 : vector<1x4x2xf32> to vector<4x2xf32>
    %c2_26 = arith.constant 2 : index
    %c0_27 = arith.constant 0 : index
    %c0_28 = arith.constant 0 : index
    %62 = vector.load %arg4[%c2_26, %c0_27, %c0_28] : memref<3x4x1xf32, #tpu.memory_space<vmem>>, vector<1x4x1xf32>
    %63 = vector.shape_cast %62 : vector<1x4x1xf32> to vector<4x1xf32>
    %c0_29 = arith.constant 0 : index
    %c0_30 = arith.constant 0 : index
    %64 = vector.load %arg8[%c0_29, %c0_30] : memref<1x128xf32, #tpu.memory_space<vmem>>, vector<1x128xf32>
    %65 = vector.shape_cast %64 : vector<1x128xf32> to vector<1x1x128xf32>
    %66 = vector.broadcast %65 : vector<1x1x128xf32> to vector<1x4x128xf32>
    %67 = arith.mulf %59, %66 : vector<1x4x128xf32>
    %68 = vector.extract_strided_slice %61 {offsets = [0, 1], sizes = [4, 1], strides = [1, 1]} : vector<4x2xf32> to vector<4x1xf32>
    %69 = vector.shape_cast %68 : vector<4x1xf32> to vector<1x4x1xf32>
    %70 = vector.broadcast %69 : vector<1x4x1xf32> to vector<1x4x128xf32>
    %71 = arith.mulf %67, %70 : vector<1x4x128xf32>
    %c4_i32 = arith.constant 4 : i32
    %72 = tpu.dynamic_rotate %67 by %c4_i32 dim 2 : vector<1x4x128xf32>, i32 -> vector<1x4x128xf32>
    %73 = vector.extract_strided_slice %61 {offsets = [0, 0], sizes = [4, 1], strides = [1, 1]} : vector<4x2xf32> to vector<4x1xf32>
    %74 = vector.shape_cast %73 : vector<4x1xf32> to vector<1x4x1xf32>
    %75 = vector.broadcast %74 : vector<1x4x1xf32> to vector<1x4x128xf32>
    %76 = arith.mulf %75, %72 : vector<1x4x128xf32>
    %77 = arith.addf %71, %76 : vector<1x4x128xf32>
    %78 = vector.shape_cast %63 : vector<4x1xf32> to vector<1x4x1xf32>
    %79 = vector.broadcast %78 : vector<1x4x1xf32> to vector<1x4x128xf32>
    %80 = arith.addf %77, %79 : vector<1x4x128xf32>
    %81 = arith.addf %80, %59 : vector<1x4x128xf32>
    %c0_31 = arith.constant 0 : index
    %c0_32 = arith.constant 0 : index
    %82 = vector.load %arg6[%c0_31, %c0_32] : memref<4x1xf32, #tpu.memory_space<vmem>>, vector<4x1xf32>
    %83 = vector.shape_cast %82 : vector<4x1xf32> to vector<1x4x1xf32>
    %84 = vector.broadcast %83 : vector<1x4x1xf32> to vector<1x4x128xf32>
    %85 = arith.mulf %81, %84 : vector<1x4x128xf32>
    %cst_33 = arith.constant dense<0.000000e+00> : vector<1x128xf32>
    %86 = vector.multi_reduction <add>, %85, %cst_33 [1] : vector<1x4x128xf32> to vector<1x128xf32>
    %87 = vector.shape_cast %86 : vector<1x128xf32> to vector<1x1x128xf32>
    %c0_34 = arith.constant 0 : index
    %c0_35 = arith.constant 0 : index
    %88 = vector.load %arg7[%c0_34, %c0_35] : memref<1x1xf32, #tpu.memory_space<vmem>>, vector<1x1xf32>
    %89 = vector.shape_cast %88 : vector<1x1xf32> to vector<1x1x1xf32>
    %90 = vector.broadcast %89 : vector<1x1x1xf32> to vector<1x1x128xf32>
    %91 = arith.addf %87, %90 : vector<1x1x128xf32>
    %c0_36 = arith.constant 0 : index
    %c0_37 = arith.constant 0 : index
    %c0_38 = arith.constant 0 : index
    %92 = vector.load %arg9[%c0_36, %c0_37, %c0_38] : memref<1x1x128xf32, #tpu.memory_space<vmem>>, vector<1x1x128xf32>
    tpu.vector_store %arg9[%c0_36, %c0_37, %c0_38], %91 {strides = array<i32>} : memref<1x1x128xf32, #tpu.memory_space<vmem>>, vector<1x1x128xf32>,
    return
  }
  func.func @transform_0(%arg0: i32) -> (i32, i32, i32) {
    %c0_i32 = arith.constant 0 : i32
    %c0_i32_0 = arith.constant 0 : i32
    %c0_i32_1 = arith.constant 0 : i32
    return %arg0, %c0_i32, %c0_i32_0 : i32, i32, i32
  }
  func.func @transform_1(%arg0: i32) -> (i32, i32) {
    %c0_i32 = arith.constant 0 : i32
    %c0_i32_0 = arith.constant 0 : i32
    %c0_i32_1 = arith.constant 0 : i32
    return %c0_i32, %c0_i32_0 : i32, i32
  }
  func.func @transform_2(%arg0: i32) -> (i32, i32, i32) {
    %c0_i32 = arith.constant 0 : i32
    %c0_i32_0 = arith.constant 0 : i32
    %c0_i32_1 = arith.constant 0 : i32
    %c0_i32_2 = arith.constant 0 : i32
    return %c0_i32, %c0_i32_0, %c0_i32_1 : i32, i32, i32
  }
  func.func @transform_3(%arg0: i32) -> (i32, i32, i32) {
    %c0_i32 = arith.constant 0 : i32
    %c0_i32_0 = arith.constant 0 : i32
    %c0_i32_1 = arith.constant 0 : i32
    %c0_i32_2 = arith.constant 0 : i32
    return %c0_i32, %c0_i32_0, %c0_i32_1 : i32, i32, i32
  }
  func.func @transform_4(%arg0: i32) -> (i32, i32, i32) {
    %c0_i32 = arith.constant 0 : i32
    %c0_i32_0 = arith.constant 0 : i32
    %c0_i32_1 = arith.constant 0 : i32
    %c0_i32_2 = arith.constant 0 : i32
    return %c0_i32, %c0_i32_0, %c0_i32_1 : i32, i32, i32
  }
  func.func @transform_5(%arg0: i32) -> (i32, i32) {
    %c0_i32 = arith.constant 0 : i32
    %c0_i32_0 = arith.constant 0 : i32
    %c0_i32_1 = arith.constant 0 : i32
    return %c0_i32, %c0_i32_0 : i32, i32
  }
  func.func @transform_6(%arg0: i32) -> (i32, i32) {
    %c0_i32 = arith.constant 0 : i32
    %c0_i32_0 = arith.constant 0 : i32
    %c0_i32_1 = arith.constant 0 : i32
    return %c0_i32, %c0_i32_0 : i32, i32
  }
  func.func @transform_7(%arg0: i32) -> (i32, i32) {
    %c0_i32 = arith.constant 0 : i32
    %c0_i32_0 = arith.constant 0 : i32
    %c0_i32_1 = arith.constant 0 : i32
    return %c0_i32, %c0_i32_0 : i32, i32
  }
  func.func @transform_8(%arg0: i32) -> (i32, i32, i32) {
    %c0_i32 = arith.constant 0 : i32
    %c0_i32_0 = arith.constant 0 : i32
    %c0_i32_1 = arith.constant 0 : i32
    return %arg0, %c0_i32, %c0_i32_0 : i32, i32, i32
  }
}

</mosaic_0001>

<llo_original>
// kernel: tpu_custom_call.1
$region0: #{tpu_custom_call.1}
  #allocation0 [shape = 'u32[]', space=smem, size = 0x4, offset = 0x4, fixed_abs, tag = 'smem constant byte address 0x4 - core index']
  #allocation1 [shape = 'u32[72,128]{1,0:T(1,128)}', space=vmem, size = 0x9000, scoped, tag = 'internal scratch']
  #allocation2 [shape = 'f32[1,1]{1,0:T(1,128)S(1)}', space=vmem, size = 0x200, scoped, tag = 'scoped memory for tpu_custom_call.1']
  %s0 = inlined_call_operand.vmem [shape: f32[2,4,128], index: 0, kind: input, shape index: {}]
  %s1 = inlined_call_operand.vmem [shape: f32[4,1], index: 1, kind: input, shape index: {}]
  %s2 = inlined_call_operand.vmem [shape: f32[3,4,2], index: 2, kind: input, shape index: {}]
  %s3 = inlined_call_operand.vmem [shape: f32[3,4,1], index: 3, kind: input, shape index: {}]
  %s4 = inlined_call_operand.vmem [shape: f32[3,4,1], index: 4, kind: input, shape index: {}]
  %s5 = inlined_call_operand.vmem [shape: f32[4,1], index: 5, kind: input, shape index: {}]
  %s6 = inlined_call_operand.<no memory space> [shape: f32[1,1], index: 6, kind: input, shape index: {}]
  %s7 = inlined_call_operand.vmem [shape: f32[1,128], index: 7, kind: input, shape index: {}]
  %s8 = inlined_call_operand.hbm [shape: f32[2,1,128], index: 8, kind: output, shape index: {}]
  %s9 = sld [smem:[#allocation0]]
  $region65: #{tpu_custom_call.1} parent=0
    _
  %s11 = ssub.s32 1, %s9
  %s12 = scalar_select 0, %s11, %s9
  %v13 = vstv %s6
  %14 = vst [vmem:[#allocation2] sm:$0x1] %v13
  $region1: #{tpu_custom_call.1} parent=0
    #allocation3 [shape = 'u8[1024]{0}', space=vmem, size = 0x400, scoped, tag = 'output window, operand 0']
    #allocation4 [shape = 's32[2]{0}', space=sflag, size = 0x8, scoped, tag = 'scoped memory for tpu_custom_call.1']
    %15 = vsyncpa [#allocation4], 0
    %s16 = scalar_lea.sflag [#allocation4], 1
    %17 = vsyncpa %s16, 0
    loop: start=0, step=1, limit=4
    $region2: #{tpu_custom_call.1} parent=1 // loop_pre_header
      _
    $region3: #{tpu_custom_call.1} parent=1 // loop_header
      %s19 = sphi 0, %s23
      %p20 = scmp.ge.s32.totalorder %s19, 4
      %s29 = sphi 0, %s31
      %s32 = sphi 0, %s29
      %s33 = sphi 0, %s32
      %s49 = sphi 0, %s33
      %s53 = sphi 0, %s53
      %s55 = sphi 0, %s53
      %s56 = sphi 0, %s55
      %s70 = sphi 0, %s56
      %s74 = sphi 0, %s74
      %s76 = sphi 0, %s74
      %s77 = sphi 0, %s76
      %s91 = sphi 0, %s77
      %s95 = sphi 0, %s95
      %s97 = sphi 0, %s95
      %s98 = sphi 0, %s97
      %s112 = sphi 0, %s98
      %s116 = sphi 0, %s116
      %s118 = sphi 0, %s116
      %s119 = sphi 0, %s118
      %s133 = sphi 0, %s119
      %s137 = sphi 0, %s137
      %s139 = sphi 0, %s137
      %s140 = sphi 0, %s139
      %s154 = sphi 0, %s140
      %s158 = sphi 0, %s158
      %s160 = sphi 0, %s158
      %s161 = sphi 0, %s160
      %s175 = sphi 0, %s161
      %s179 = sphi 0, %s179
      %s181 = sphi 0, %s179
      %s182 = sphi 0, %s181
      %s196 = sphi 0, %s182
      %s202 = sphi 0, %s204
      %s205 = sphi 0, %s202
      %s206 = sphi 0, %s205
      %s222 = sphi 0, %s206
    $region4: #{tpu_custom_call.1} parent=1 // loop_header_branch
      %22 = sbr.rel (%p20) target = $region8
    $region5: #{tpu_custom_call.1} parent=1 // loop_body
      %s24 = ssub.s32 %s19, 1
      %s25 = ssub.s32 %s19, 2
      %s26 = sadd.s32 %s19, 1
      %s27 = ssub.s32 %s19, %s26
      %p28 = scmp.eq.s32.totalorder %s27, 0
      %s30 = sadd.s32 %s29, 1
      %s31 = scalar_select %p28, %s29, %s30
      %p34 = pneg %p28
      %p35 = scmp.eq.s32.totalorder %s19, 1
      %p36 = por %p34, %p35
      %p37 = scmp.ne.s32.totalorder %s29, %s32
      %p38 = scmp.eq.s32.totalorder %s19, 0
      %p39 = por %p37, %p38
      %p40 = scmp.ne.s32.totalorder %s29, %s32
      %p41 = scmp.eq.s32.totalorder %s24, 1
      %p42 = por %p40, %p41
      %p43 = scmp.ne.s32.totalorder %s32, %s33
      %p44 = scmp.eq.s32.totalorder %s24, 0
      %p45 = por %p43, %p44
      %p46 = scmp.ne.s32.totalorder %s32, %s33
      %p47 = scmp.eq.s32.totalorder %s25, 1
      %p48 = por %p46, %p47
      %p50 = scmp.ne.s32.totalorder %s33, %s49
      %p51 = scmp.eq.s32.totalorder %s25, 0
      %p52 = por %p50, %p51
      %s54 = sadd.s32 %s53, 1
      %p57 = scmp.eq.s32.totalorder %s19, 1
      %p58 = scmp.ne.s32.totalorder %s53, %s55
      %p59 = scmp.eq.s32.totalorder %s19, 0
      %p60 = por %p58, %p59
      %p61 = scmp.ne.s32.totalorder %s53, %s55
      %p62 = scmp.eq.s32.totalorder %s24, 1
      %p63 = por %p61, %p62
      %p64 = scmp.ne.s32.totalorder %s55, %s56
      %p65 = scmp.eq.s32.totalorder %s24, 0
      %p66 = por %p64, %p65
      %p67 = scmp.ne.s32.totalorder %s55, %s56
      %p68 = scmp.eq.s32.totalorder %s25, 1
      %p69 = por %p67, %p68
      %p71 = scmp.ne.s32.totalorder %s56, %s70
      %p72 = scmp.eq.s32.totalorder %s25, 0
      %p73 = por %p71, %p72
      %s75 = sadd.s32 %s74, 1
      %p78 = scmp.eq.s32.totalorder %s19, 1
      %p79 = scmp.ne.s32.totalorder %s74, %s76
      %p80 = scmp.eq.s32.totalorder %s19, 0
      %p81 = por %p79, %p80
      %p82 = scmp.ne.s32.totalorder %s74, %s76
      %p83 = scmp.eq.s32.totalorder %s24, 1
      %p84 = por %p82, %p83
      %p85 = scmp.ne.s32.totalorder %s76, %s77
      %p86 = scmp.eq.s32.totalorder %s24, 0
      %p87 = por %p85, %p86
      %p88 = scmp.ne.s32.totalorder %s76, %s77
      %p89 = scmp.eq.s32.totalorder %s25, 1
      %p90 = por %p88, %p89
      %p92 = scmp.ne.s32.totalorder %s77, %s91
      %p93 = scmp.eq.s32.totalorder %s25, 0
      %p94 = por %p92, %p93
      %s96 = sadd.s32 %s95, 1
      %p99 = scmp.eq.s32.totalorder %s19, 1
      %p100 = scmp.ne.s32.totalorder %s95, %s97
      %p101 = scmp.eq.s32.totalorder %s19, 0
      %p102 = por %p100, %p101
      %p103 = scmp.ne.s32.totalorder %s95, %s97
      %p104 = scmp.eq.s32.totalorder %s24, 1
      %p105 = por %p103, %p104
      %p106 = scmp.ne.s32.totalorder %s97, %s98
      %p107 = scmp.eq.s32.totalorder %s24, 0
      %p108 = por %p106, %p107
      %p109 = scmp.ne.s32.totalorder %s97, %s98
      %p110 = scmp.eq.s32.totalorder %s25, 1
      %p111 = por %p109, %p110
      %p113 = scmp.ne.s32.totalorder %s98, %s112
      %p114 = scmp.eq.s32.totalorder %s25, 0
      %p115 = por %p113, %p114
      %s117 = sadd.s32 %s116, 1
      %p120 = scmp.eq.s32.totalorder %s19, 1
      %p121 = scmp.ne.s32.totalorder %s116, %s118
      %p122 = scmp.eq.s32.totalorder %s19, 0
      %p123 = por %p121, %p122
      %p124 = scmp.ne.s32.totalorder %s116, %s118
      %p125 = scmp.eq.s32.totalorder %s24, 1
      %p126 = por %p124, %p125
      %p127 = scmp.ne.s32.totalorder %s118, %s119
      %p128 = scmp.eq.s32.totalorder %s24, 0
      %p129 = por %p127, %p128
      %p130 = scmp.ne.s32.totalorder %s118, %s119
      %p131 = scmp.eq.s32.totalorder %s25, 1
      %p132 = por %p130, %p131
      %p134 = scmp.ne.s32.totalorder %s119, %s133
      %p135 = scmp.eq.s32.totalorder %s25, 0
      %p136 = por %p134, %p135
      %s138 = sadd.s32 %s137, 1
      %p141 = scmp.eq.s32.totalorder %s19, 1
      %p142 = scmp.ne.s32.totalorder %s137, %s139
      %p143 = scmp.eq.s32.totalorder %s19, 0
      %p144 = por %p142, %p143
      %p145 = scmp.ne.s32.totalorder %s137, %s139
      %p146 = scmp.eq.s32.totalorder %s24, 1
      %p147 = por %p145, %p146
      %p148 = scmp.ne.s32.totalorder %s139, %s140
      %p149 = scmp.eq.s32.totalorder %s24, 0
      %p150 = por %p148, %p149
      %p151 = scmp.ne.s32.totalorder %s139, %s140
      %p152 = scmp.eq.s32.totalorder %s25, 1
      %p153 = por %p151, %p152
      %p155 = scmp.ne.s32.totalorder %s140, %s154
      %p156 = scmp.eq.s32.totalorder %s25, 0
      %p157 = por %p155, %p156
      %s159 = sadd.s32 %s158, 1
      %p162 = scmp.eq.s32.totalorder %s19, 1
      %p163 = scmp.ne.s32.totalorder %s158, %s160
      %p164 = scmp.eq.s32.totalorder %s19, 0
      %p165 = por %p163, %p164
      %p166 = scmp.ne.s32.totalorder %s158, %s160
      %p167 = scmp.eq.s32.totalorder %s24, 1
      %p168 = por %p166, %p167
      %p169 = scmp.ne.s32.totalorder %s160, %s161
      %p170 = scmp.eq.s32.totalorder %s24, 0
      %p171 = por %p169, %p170
      %p172 = scmp.ne.s32.totalorder %s160, %s161
      %p173 = scmp.eq.s32.totalorder %s25, 1
      %p174 = por %p172, %p173
      %p176 = scmp.ne.s32.totalorder %s161, %s175
      %p177 = scmp.eq.s32.totalorder %s25, 0
      %p178 = por %p176, %p177
      %s180 = sadd.s32 %s179, 1
      %p183 = scmp.eq.s32.totalorder %s19, 1
      %p184 = scmp.ne.s32.totalorder %s179, %s181
      %p185 = scmp.eq.s32.totalorder %s19, 0
      %p186 = por %p184, %p185
      %p187 = scmp.ne.s32.totalorder %s179, %s181
      %p188 = scmp.eq.s32.totalorder %s24, 1
      %p189 = por %p187, %p188
      %p190 = scmp.ne.s32.totalorder %s181, %s182
      %p191 = scmp.eq.s32.totalorder %s24, 0
      %p192 = por %p190, %p191
      %p193 = scmp.ne.s32.totalorder %s181, %s182
      %p194 = scmp.eq.s32.totalorder %s25, 1
      %p195 = por %p193, %p194
      %p197 = scmp.ne.s32.totalorder %s182, %s196
      %p198 = scmp.eq.s32.totalorder %s25, 0
      %p199 = por %p197, %p198
      %s200 = ssub.s32 %s19, %s26
      %p201 = scmp.eq.s32.totalorder %s200, 0
      %s203 = sadd.s32 %s202, 1
      %s204 = scalar_select %p201, %s202, %s203
      %p207 = pneg %p201
      %p208 = scmp.eq.s32.totalorder %s19, 1
      %p209 = por %p207, %p208
      %p210 = scmp.ne.s32.totalorder %s202, %s205
      %p211 = scmp.eq.s32.totalorder %s19, 0
      %p212 = por %p210, %p211
      %p213 = scmp.ne.s32.totalorder %s202, %s205
      %p214 = scmp.eq.s32.totalorder %s24, 1
      %p215 = por %p213, %p214
      %p216 = scmp.ne.s32.totalorder %s205, %s206
      %p217 = scmp.eq.s32.totalorder %s24, 0
      %p218 = por %p216, %p217
      %p219 = scmp.ne.s32.totalorder %s205, %s206
      %p220 = scmp.eq.s32.totalorder %s25, 1
      %p221 = por %p219, %p220
      %p223 = scmp.ne.s32.totalorder %s206, %s222
      %p224 = scmp.eq.s32.totalorder %s25, 0
      %p225 = por %p223, %p224
      %p226 = scmp.le.s32.totalorder 1, %s19
      %p227 = scmp.lt.s32.totalorder %s19, 3
      %p228 = pnand %p226, %p227
      %p229 = pneg %p228
      // Predicated region
      $region9: #{tpu_custom_call.1} parent=5 // pred_check
        _
      $region10: #{tpu_custom_call.1} parent=5 // pred_check_branch
        %231 = sbr.rel (%p228) target = $region12
      $region11: #{tpu_custom_call.1} parent=5 // pred_region
        %s232 = ssub.s32 %s19, 1
        // Predicated region
        $region13: #{tpu_custom_call.1} parent=11 // pred_check
          %p233 = pneg %p66
        $region14: #{tpu_custom_call.1} parent=11 // pred_check_branch
          %235 = sbr.rel (%p233) target = $region16
        $region15: #{tpu_custom_call.1} parent=11 // pred_region
          _
        $region16: #{tpu_custom_call.1} parent=11 // pred_fallthru
          _
        // Predicated region
        $region17: #{tpu_custom_call.1} parent=11 // pred_check
          %p236 = pneg %p87
        $region18: #{tpu_custom_call.1} parent=11 // pred_check_branch
          %238 = sbr.rel (%p236) target = $region20
        $region19: #{tpu_custom_call.1} parent=11 // pred_region
          _
        $region20: #{tpu_custom_call.1} parent=11 // pred_fallthru
          _
        // Predicated region
        $region21: #{tpu_custom_call.1} parent=11 // pred_check
          %p239 = pneg %p108
        $region22: #{tpu_custom_call.1} parent=11 // pred_check_branch
          %241 = sbr.rel (%p239) target = $region24
        $region23: #{tpu_custom_call.1} parent=11 // pred_region
          _
        $region24: #{tpu_custom_call.1} parent=11 // pred_fallthru
          _
        // Predicated region
        $region25: #{tpu_custom_call.1} parent=11 // pred_check
          %p242 = pneg %p129
        $region26: #{tpu_custom_call.1} parent=11 // pred_check_branch
          %244 = sbr.rel (%p242) target = $region28
        $region27: #{tpu_custom_call.1} parent=11 // pred_region
          _
        $region28: #{tpu_custom_call.1} parent=11 // pred_fallthru
          _
        // Predicated region
        $region29: #{tpu_custom_call.1} parent=11 // pred_check
          %p245 = pneg %p150
        $region30: #{tpu_custom_call.1} parent=11 // pred_check_branch
          %247 = sbr.rel (%p245) target = $region32
        $region31: #{tpu_custom_call.1} parent=11 // pred_region
          _
        $region32: #{tpu_custom_call.1} parent=11 // pred_fallthru
          _
        // Predicated region
        $region33: #{tpu_custom_call.1} parent=11 // pred_check
          %p248 = pneg %p171
        $region34: #{tpu_custom_call.1} parent=11 // pred_check_branch
          %250 = sbr.rel (%p248) target = $region36
        $region35: #{tpu_custom_call.1} parent=11 // pred_region
          _
        $region36: #{tpu_custom_call.1} parent=11 // pred_fallthru
          _
        // Predicated region
        $region37: #{tpu_custom_call.1} parent=11 // pred_check
          %p251 = pneg %p192
        $region38: #{tpu_custom_call.1} parent=11 // pred_check_branch
          %253 = sbr.rel (%p251) target = $region40
        $region39: #{tpu_custom_call.1} parent=11 // pred_region
          _
        $region40: #{tpu_custom_call.1} parent=11 // pred_fallthru
          _
      $region12: #{tpu_custom_call.1} parent=5 // pred_fallthru
        _
      %p254 = scmp.lt.s32.totalorder %s19, 2
      // Predicated region
      $region41: #{tpu_custom_call.1} parent=5 // pred_check
        %p255 = pneg %p254
      $region42: #{tpu_custom_call.1} parent=5 // pred_check_branch
        %257 = sbr.rel (%p255) target = $region44
      $region43: #{tpu_custom_call.1} parent=5 // pred_region
        // Predicated region
        $region45: #{tpu_custom_call.1} parent=43 // pred_check
          %p258 = pneg %p39
        $region46: #{tpu_custom_call.1} parent=43 // pred_check_branch
          %260 = sbr.rel (%p258) target = $region48
        $region47: #{tpu_custom_call.1} parent=43 // pred_region
          %p261 = scmp.lt.s32.totalorder %s19, 1
          %s262 = scalar_select %p261, %s19, 1
          %s263 = smul.addr %s262, 4
          %s264 = scalar_lea.vmem %s0, %s263
        $region48: #{tpu_custom_call.1} parent=43 // pred_fallthru
          _
      $region44: #{tpu_custom_call.1} parent=5 // pred_fallthru
        _
      %p265 = scmp.le.s32.totalorder 1, %s19
      %p266 = scmp.lt.s32.totalorder %s19, 3
      %p267 = pnand %p265, %p266
      %p268 = pneg %p267
      // Predicated region
      $region49: #{tpu_custom_call.1} parent=5 // pred_check
        _
      $region50: #{tpu_custom_call.1} parent=5 // pred_check_branch
        %270 = sbr.rel (%p267) target = $region52
      $region51: #{tpu_custom_call.1} parent=5 // pred_region
        %s271 = ssub.s32 %s19, 1
        %p272 = scmp.lt.s32.totalorder %s24, 1
        %s273 = scalar_select %p272, %s24, 1
        %s274 = smul.addr %s273, 4
        %s275 = scalar_lea.vmem %s0, %s274
        %p276 = pneg %p45
        %p277 = pneg %p42
        %p278 = pneg %p66
        %p279 = pneg %p63
        %p280 = pneg %p87
        %p281 = pneg %p84
        %p282 = pneg %p108
        %p283 = pneg %p105
        %p284 = pneg %p129
        %p285 = pneg %p126
        %p286 = pneg %p150
        %p287 = pneg %p147
        %p288 = pneg %p171
        %p289 = pneg %p168
        %p290 = pneg %p192
        %p291 = pneg %p189
        %p292 = pneg %p218
        %p293 = pneg %p215
        %s294 = sand.u32 %s205, 1
        %s295 = scalar_lea.sflag [#allocation4], %s294
        %s296 = sand.u32 %s205, 1
        %s297 = scalar_lea.vmem [#allocation3], %s296
        %p298 = scmp.lt.s32.totalorder %s24, 1
        %s299 = scalar_select %p298, %s24, 1
        %s300 = smul.addr %s299, 4
        %s301 = scalar_lea.vmem %s0, %s300
        %v302 = vld [vmem:[%s301] sm:$0xf]
        %v303 = vld [vmem:[%s1] sm:$0xf]
        %305 = vset.pattern.permute.xlu0 0
        %306 = vperm.xlu0 %305, %v303
        %v307 = vpop.permute.xlu0 %306
        %v309 = vmul.f32 %v302, %v307
        %v310 = vld [vmem:[%s2] sm:$0xf]
        %v311 = vld [vmem:[%s3] sm:$0xf]
        %313 = vset.pattern.permute.xlu0 1
        %314 = vperm.xlu0 %313, %v310
        %v315 = vpop.permute.xlu0 %314
        %v317 = vmul.f32 %v309, %v315
        %318 = vrot.lane.b32.xlu0 %v309, 1
        %v319 = vpop.permute.xlu0 %318
        %320 = vset.pattern.permute.xlu0 0
        %321 = vperm.xlu0 %320, %v310
        %v322 = vpop.permute.xlu0 %321
        %v324 = vmul.f32 %v322, %v319
        %v325 = vadd.f32 %v317, %v324
        %327 = vset.pattern.permute.xlu0 0
        %328 = vperm.xlu0 %327, %v311
        %v329 = vpop.permute.xlu0 %328
        %v331 = vadd.f32 %v325, %v329
        %v332 = vld [vmem:[%s4] sm:$0xf]
        %vm333 = vcmp.gt.f32.partialorder %v331, 0.0
        %335 = vset.pattern.permute.xlu0 0
        %336 = vperm.xlu0 %335, %v332
        %v337 = vpop.permute.xlu0 %336
        %v339 = vmul.f32 %v337, %v331
        %v340 = vsel %vm333, %v331, %v339
        %s341 = scalar_lea.vmem %s2, 4
        %v342 = vld [vmem:[%s341] sm:$0xf]
        %s343 = scalar_lea.vmem %s3, 4
        %v344 = vld [vmem:[%s343] sm:$0xf]
        %v345 = vld [vmem:[%s7] sm:$0x1]
        %v347 = vperm.slane %v345, 0
        %v349 = vmul.f32 %v340, %v347
        %351 = vset.pattern.permute.xlu0 1
        %352 = vperm.xlu0 %351, %v342
        %v353 = vpop.permute.xlu0 %352
        %v355 = vmul.f32 %v349, %v353
        %356 = vrot.lane.b32.xlu0 %v349, 2
        %v357 = vpop.permute.xlu0 %356
        %358 = vset.pattern.permute.xlu0 0
        %359 = vperm.xlu0 %358, %v342
        %v360 = vpop.permute.xlu0 %359
        %v362 = vmul.f32 %v360, %v357
        %v363 = vadd.f32 %v355, %v362
        %365 = vset.pattern.permute.xlu0 0
        %366 = vperm.xlu0 %365, %v344
        %v367 = vpop.permute.xlu0 %366
        %v369 = vadd.f32 %v363, %v367
        %v370 = vadd.f32 %v369, %v340
        %s371 = scalar_lea.vmem %s4, 4
        %v372 = vld [vmem:[%s371] sm:$0xf]
        %vm373 = vcmp.gt.f32.partialorder %v370, 0.0
        %375 = vset.pattern.permute.xlu0 0
        %376 = vperm.xlu0 %375, %v372
        %v377 = vpop.permute.xlu0 %376
        %v379 = vmul.f32 %v377, %v370
        %v380 = vsel %vm373, %v370, %v379
        %s381 = scalar_lea.vmem %s2, 8
        %v382 = vld [vmem:[%s381] sm:$0xf]
        %s383 = scalar_lea.vmem %s3, 8
        %v384 = vld [vmem:[%s383] sm:$0xf]
        %v385 = vmul.f32 %v380, %v347
        %387 = vset.pattern.permute.xlu0 1
        %388 = vperm.xlu0 %387, %v382
        %v389 = vpop.permute.xlu0 %388
        %v391 = vmul.f32 %v385, %v389
        %392 = vrot.lane.b32.xlu0 %v385, 4
        %v393 = vpop.permute.xlu0 %392
        %394 = vset.pattern.permute.xlu0 0
        %395 = vperm.xlu0 %394, %v382
        %v396 = vpop.permute.xlu0 %395
        %v398 = vmul.f32 %v396, %v393
        %v399 = vadd.f32 %v391, %v398
        %401 = vset.pattern.permute.xlu0 0
        %402 = vperm.xlu0 %401, %v384
        %v403 = vpop.permute.xlu0 %402
        %v405 = vadd.f32 %v399, %v403
        %v406 = vadd.f32 %v405, %v380
        %v407 = vld [vmem:[%s5] sm:$0xf]
        %409 = vset.pattern.permute.xlu0 0
        %410 = vperm.xlu0 %409, %v407
        %v411 = vpop.permute.xlu0 %410
        %v413 = vmul.f32 %v406, %v411
        %vm414 = vcmask 1043456
        %v415 = vsel %vm414, %v413, 0.0
        %v416 = vrot.slane %v415, 4
        %v417 = vadd.f32 %v415, %v416
        %v418 = vrot.slane %v417, 2
        %v419 = vadd.f32 %v417, %v418
        %v420 = vrot.slane %v419, 1
        %v421 = vadd.f32 %v419, %v420
        %v422 = vld [vmem:[#allocation2] sm:$0x1]
        %424 = vset.pattern.permute.xlu0 0
        %425 = vperm.xlu0 %424, %v422
        %v426 = vpop.permute.xlu0 %425
        %v428 = vperm.slane %v426, 0
        %v429 = vadd.f32 %v421, %v428
        %430 = vst [vmem:[%s297] sm:$0x1] %v429
        %s431 = sand.u32 %s205, 1
        %s432 = scalar_lea.sflag [#allocation4], %s431
        %s433 = sand.u32 %s205, 1
        %s434 = scalar_lea.vmem [#allocation3], %s433
        // Predicated region
        $region53: #{tpu_custom_call.1} parent=51 // pred_check
          %p435 = pneg %p215
        $region54: #{tpu_custom_call.1} parent=51 // pred_check_branch
          %437 = sbr.rel (%p435) target = $region56
        $region55: #{tpu_custom_call.1} parent=51 // pred_region
          %439 = vsyncadd %s432, 0
          %s440 = scalar_lea.hbm %s8, %s24
          %s442 = sshll.u32 %s434, 4
          %s443 = int_to_ptr.vmem [resolvable:$true] %s442
          %s444 = sshll.u32 %s440, 4
          %s445 = int_to_ptr.hbm [resolvable:$true] %s444
          %447 = dma.vmem_to_hbm [thread:$0]  %s443, 16, %s445, %s432
        $region56: #{tpu_custom_call.1} parent=51 // pred_fallthru
          _
      $region52: #{tpu_custom_call.1} parent=5 // pred_fallthru
        _
      %p448 = scmp.le.s32.totalorder 2, %s19
      // Predicated region
      $region57: #{tpu_custom_call.1} parent=5 // pred_check
        %p449 = pneg %p448
      $region58: #{tpu_custom_call.1} parent=5 // pred_check_branch
        %451 = sbr.rel (%p449) target = $region60
      $region59: #{tpu_custom_call.1} parent=5 // pred_region
        %s452 = ssub.s32 %s19, 2
        // Predicated region
        $region61: #{tpu_custom_call.1} parent=59 // pred_check
          %p453 = pneg %p221
        $region62: #{tpu_custom_call.1} parent=59 // pred_check_branch
          %455 = sbr.rel (%p453) target = $region64
        $region63: #{tpu_custom_call.1} parent=59 // pred_region
          %s456 = sand.u32 %s206, 1
          %s457 = scalar_lea.sflag [#allocation4], %s456
          %s458 = sand.u32 %s206, 1
          %s459 = scalar_lea.vmem [#allocation3], %s458
          %461 = dma.done %s457, 16
        $region64: #{tpu_custom_call.1} parent=59 // pred_fallthru
          _
      $region60: #{tpu_custom_call.1} parent=5 // pred_fallthru
        _
    $region6: #{tpu_custom_call.1} parent=1 // loop_footer
      %s23 = sadd.s32 1, %s19
    $region7: #{tpu_custom_call.1} parent=1 // loop_footer_branch
      %18 = sbr.rel target = $region3
    $region8: #{tpu_custom_call.1} parent=1 // loop_exit
      _
    %462 = vsyncpa [#allocation4], 1
    %s463 = scalar_lea.sflag [#allocation4], 1
    %464 = vsyncpa %s463, 1

</llo_original>
